<compile_context>
chip_gen: v6e
topology: v6e:2x2x1
jax: 0.10.0
libtpu: 0.0.40
codegen_flags: <defaults>
</compile_context>

<pallas_src>
import functools

import jax
import jax.numpy as jnp
from jax.experimental import pallas as pl
from jax.experimental.pallas import tpu as pltpu

EPS = 1e-5  # nn.InstanceNorm2d default


def _round_up(x, m):
    return (x + m - 1) // m * m


def _vmem_capacity_bytes():
    try:
        info = pltpu.get_tpu_info()
        cap = getattr(info, "vmem_capacity_bytes", None)
        if cap:
            return int(cap)
    except Exception:
        pass
    return 64 * 1024 * 1024  # conservative default (v7x per-core VMEM)


def _choose_channel_tile(c_x):
    """Return (padded c_x, MXU-friendly channel tile)."""
    if c_x <= 256:
        return c_x, c_x
    for t in (256, 128, 64, 32, 16, 8):
        if c_x % t == 0:
            return c_x, t
    # No aligned divisor: pad the channel axis (zero rows, sliced off at the end).
    return _round_up(c_x, 128), 128


def _mxu_row_sums(h32):
    """Per-row sum and sum-of-squares over the lane (HW) axis via MXU ones-matmuls."""
    hw = h32.shape[-1]
    ones = jnp.ones((hw, 1), jnp.float32)
    s1 = jnp.dot(h32, ones, preferred_element_type=jnp.float32)         # (tc, 1)
    s2 = jnp.dot(h32 * h32, ones, preferred_element_type=jnp.float32)   # (tc, 1)
    return s1, s2


def _moments_to_scale(s1, s2, inv_hw):
    mean = s1 * inv_hw
    var = jnp.maximum(s2 * inv_hw - mean * mean, 0.0)   # biased variance (padding-safe)
    return mean, jax.lax.rsqrt(var + EPS)


def _sd_kernel_single(h_ref, s_ref, w_ref, o_ref, *, inv_hw):
    # h_ref: (1, tc, HWp)      current image, current channel tile
    # s_ref: (1, cs+1, HWp)    current image's style map + ones row (bias fold)
    # w_ref: (1, 2*tc, cs+1)   rows = [conv1|bias1 ; conv2|bias2] for this tile
    # o_ref: (1, tc, HWp)
    tc = h_ref.shape[1]
    h = h_ref[0].astype(jnp.float32)                       # (tc, HWp)
    s1, s2 = _mxu_row_sums(h)
    mean, rstd = _moments_to_scale(s1, s2, inv_hw)

    gb = jnp.dot(w_ref[0], s_ref[0], preferred_element_type=jnp.float32)  # (2tc, HWp)
    if o_ref.dtype == jnp.bfloat16:
        gb = gb.astype(jnp.bfloat16)   # shrink resident footprint on bf16 models
    beta = gb[:tc]
    gamma = gb[tc:]
    o_ref[0] = ((gamma * rstd) * (h - mean) + beta).astype(o_ref.dtype)


def _sd_kernel_tiled(h_ref, s_ref, w_ref, o_ref, sum_ref, ssq_ref, *, inv_hw):
    # grid = (N, 2, n_hw, n_ct): phase 0 accumulates stats, phase 1 applies.
    # h_ref: (1, tc, thw); s_ref: (1, cs+1, thw); w_ref: (n_ct, 2*tc, cs+1) resident
    # o_ref: (1, tc, thw); sum_ref/ssq_ref: (n_ct, tc, 1) f32 scratch accumulators.
    p = pl.program_id(1)
    t = pl.program_id(2)
    ct = pl.program_id(3)
    tc = h_ref.shape[1]
    h = h_ref[0].astype(jnp.float32)

    @pl.when(p == 0)
    def _accumulate():
        s1, s2 = _mxu_row_sums(h)

        @pl.when(t == 0)
        def _init():
            sum_ref[ct] = s1
            ssq_ref[ct] = s2

        @pl.when(t != 0)
        def _acc():
            sum_ref[ct] += s1
            ssq_ref[ct] += s2

    @pl.when(p == 1)
    def _apply():
        mean, rstd = _moments_to_scale(sum_ref[ct], ssq_ref[ct], inv_hw)
        gb = jnp.dot(w_ref[ct], s_ref[0], preferred_element_type=jnp.float32)
        if o_ref.dtype == jnp.bfloat16:
            gb_n = gb.astype(jnp.bfloat16)
        else:
            gb_n = gb
        beta = gb_n[:tc]
        gamma = gb_n[tc:]
        o_ref[0] = ((gamma * rstd) * (h - mean) + beta).astype(o_ref.dtype)


def sd_forward(h_nchw, style_nchw, w1, b1, w2, b2, *, ct_tile=None, hw_tile=None):
    """SD forward.  h: (N,c_x,H,W); style: (N,c_style,H,W);
    w1/w2: (c_x, c_style) 1x1-conv weights; b1/b2: (c_x,).
    ct_tile / hw_tile: optional tiling overrides (testing / tuning)."""
    N, c_x, H, W = h_nchw.shape
    Ns, c_style, Hs, Ws = style_nchw.shape
    assert (N, H, W) == (Ns, Hs, Ws)
    HW = H * W
    cs1 = c_style + 1
    out_dtype = h_nchw.dtype
    isz = jnp.dtype(h_nchw.dtype).itemsize
    ssz = jnp.dtype(style_nchw.dtype).itemsize
    wsz = jnp.dtype(w1.dtype).itemsize

    # ---- VMEM budget & tile selection (per-generation, via get_tpu_info) ----
    vmem_cap = _vmem_capacity_bytes()
    budget = int(0.55 * vmem_cap)       # double-buffered blocks + f32 body temps
    HW128 = _round_up(HW, 128)

    def single_bytes(tc_, hw_):
        blocks = 2 * (tc_ * hw_ * isz + cs1 * hw_ * ssz + 2 * tc_ * cs1 * wsz)
        blocks += 2 * tc_ * hw_ * isz                        # double-buffered output
        temps = 6 * tc_ * hw_ * 4                            # f32 body intermediates
        return blocks + temps

    def tiled_bytes(tc_, thw_, n_ct_):
        blocks = 2 * (tc_ * thw_ * isz + cs1 * thw_ * ssz) + 2 * tc_ * thw_ * isz
        weights = n_ct_ * 2 * tc_ * cs1 * wsz                # resident weight stack
        temps = 6 * tc_ * thw_ * 4
        scratch = 2 * n_ct_ * tc_ * 128 * 4                  # lane-padded stats
        return blocks + weights + temps + scratch

    if ct_tile is not None:
        tc = int(ct_tile)
    else:
        _, tc = _choose_channel_tile(c_x)
        # Shrink tc (sublane-aligned halving) until the single-pass set fits.
        while single_bytes(tc, HW128) > budget and tc % 2 == 0 and (tc // 2) % 8 == 0:
            tc //= 2
    c_xp = _round_up(c_x, tc)
    n_ct = c_xp // tc

    use_tiled = hw_tile is not None or single_bytes(tc, HW128) > budget
    if use_tiled:
        if hw_tile is not None:
            thw = _round_up(int(hw_tile), 128)
        else:
            thw = HW128
            while tiled_bytes(tc, thw, n_ct) > budget and thw > 128:
                thw = max(128, _round_up(thw // 2, 128))
        HWp = _round_up(HW, thw)
        n_hw = HWp // thw
        working_set = tiled_bytes(tc, thw, n_ct)
    else:
        thw = HWp = HW128
        n_hw = 1
        working_set = single_bytes(tc, HWp)

    vmem_limit = int(min(0.72 * vmem_cap, max(4 * working_set, 32 * 1024 * 1024)))

    # ---- Wrapper-side layout prep (reshape / pad only; no HBM transposes) ----
    h_rows = h_nchw.reshape(N, c_x, HW)
    s_rows = style_nchw.reshape(N, c_style, HW)
    if HWp != HW:
        h_rows = jnp.pad(h_rows, ((0, 0), (0, 0), (0, HWp - HW)))
        s_rows = jnp.pad(s_rows, ((0, 0), (0, 0), (0, HWp - HW)))
    if c_xp != c_x:
        h_rows = jnp.pad(h_rows, ((0, 0), (0, c_xp - c_x), (0, 0)))
    # Ones row folds the conv biases into the single matmul.
    s_aug = jnp.concatenate([s_rows, jnp.ones((N, 1, HWp), s_rows.dtype)], axis=1)

    w_aug = jnp.concatenate(
        [jnp.stack([w1, w2], axis=0),                         # (2, c_x, c_style)
         jnp.stack([b1, b2], axis=0)[..., None]], axis=-1)    # + bias column
    if c_xp != c_x:
        w_aug = jnp.pad(w_aug, ((0, 0), (0, c_xp - c_x), (0, 0)))
    # Pre-flattened per-tile weight stack: rows [conv1-tile ; conv2-tile].
    w_tiles = (w_aug.reshape(2, n_ct, tc, cs1)
                    .transpose(1, 0, 2, 3)
                    .reshape(n_ct, 2 * tc, cs1))

    inv_hw = float(1.0 / HW)   # true element count (padded columns are zero)

    if not use_tiled:
        kernel = functools.partial(_sd_kernel_single, inv_hw=inv_hw)
        out_rows = pl.pallas_call(
            kernel,
            out_shape=jax.ShapeDtypeStruct((N, c_xp, HWp), out_dtype),
            grid_spec=pltpu.PrefetchScalarGridSpec(
                num_scalar_prefetch=0,
                grid=(N, n_ct),
                in_specs=[
                    pl.BlockSpec((1, tc, HWp), lambda n, ct: (n, ct, 0)),
                    pl.BlockSpec((1, cs1, HWp), lambda n, ct: (n, 0, 0)),    # resident per image
                    pl.BlockSpec((1, 2 * tc, cs1), lambda n, ct: (ct, 0, 0)),
                ],
                out_specs=pl.BlockSpec((1, tc, HWp), lambda n, ct: (n, ct, 0)),
            ),
            compiler_params=pltpu.CompilerParams(
                dimension_semantics=("parallel", "parallel"),
                vmem_limit_bytes=vmem_limit),
        )(h_rows, s_aug, w_tiles)
    else:
        kernel = functools.partial(_sd_kernel_tiled, inv_hw=inv_hw)
        out_rows = pl.pallas_call(
            kernel,
            out_shape=jax.ShapeDtypeStruct((N, c_xp, HWp), out_dtype),
            grid_spec=pltpu.PrefetchScalarGridSpec(
                num_scalar_prefetch=0,
                grid=(N, 2, n_hw, n_ct),        # (image, phase, hw tile, channel tile)
                in_specs=[
                    pl.BlockSpec((1, tc, thw), lambda n, p, t, ct: (n, ct, t)),
                    # Style: parked at tile 0 during phase 0 (not read); walks HW in phase 1.
                    pl.BlockSpec((1, cs1, thw), lambda n, p, t, ct: (n, 0, t * p)),
                    # Full weight stack stays VMEM-resident for the whole kernel.
                    pl.BlockSpec((n_ct, 2 * tc, cs1), lambda n, p, t, ct: (0, 0, 0)),
                ],
                # Constant block during phase 0 (never written there); walks in phase 1.
                out_specs=pl.BlockSpec((1, tc, thw),
                                       lambda n, p, t, ct: (n, ct * p, t * p)),
                scratch_shapes=[pltpu.VMEM((n_ct, tc, 1), jnp.float32),
                                pltpu.VMEM((n_ct, tc, 1), jnp.float32)],
            ),
            compiler_params=pltpu.CompilerParams(
                dimension_semantics=("parallel", "arbitrary", "arbitrary", "arbitrary"),
                vmem_limit_bytes=vmem_limit),
        )(h_rows, s_aug, w_tiles)

    return out_rows[:, :c_x, :HW].reshape(N, c_x, H, W)


def sd_reference(h, style, w1, b1, w2, b2):
    """Pure-JAX NCHW reference matching the PyTorch module."""
    mean = jnp.mean(h, axis=(2, 3), keepdims=True)
    var = jnp.mean((h - mean) ** 2, axis=(2, 3), keepdims=True)
    h_norm = (h - mean) / jnp.sqrt(var + EPS)
    beta = jnp.einsum("ncHW,oc->noHW", style, w1) + b1[None, :, None, None]
    gamma = jnp.einsum("ncHW,oc->noHW", style, w2) + b2[None, :, None, None]
    return gamma * h_norm + beta


if __name__ == "__main__":
    N, c_x, c_style, H, W = 2, 16, 4, 16, 16

    key = jax.random.PRNGKey(0)
    k_h, k_s, k_w1, k_b1, k_w2, k_b2 = jax.random.split(key, 6)

    h = jax.random.normal(k_h, (N, c_x, H, W), dtype=jnp.float32)
    style = jax.random.normal(k_s, (N, c_style, H, W), dtype=jnp.float32)
    w1 = 0.1 * jax.random.normal(k_w1, (c_x, c_style), dtype=jnp.float32)
    b1 = 0.1 * jax.random.normal(k_b1, (c_x,), dtype=jnp.float32)
    w2 = 0.1 * jax.random.normal(k_w2, (c_x, c_style), dtype=jnp.float32)
    b2 = 0.1 * jax.random.normal(k_b2, (c_x,), dtype=jnp.float32)

    ref = sd_reference(h, style, w1, b1, w2, b2)

    # 1) Default path: single-pass kernel, whole HW per block.
    out = sd_forward(h, style, w1, b1, w2, b2)
    jax.block_until_ready(out)
    assert out.shape == ref.shape
    assert jnp.allclose(out, ref, atol=2e-4, rtol=2e-4), float(jnp.max(jnp.abs(out - ref)))

    # 2) Channel-tiled single-pass path (style stays resident across ct tiles).
    out_ct = sd_forward(h, style, w1, b1, w2, b2, ct_tile=8)
    jax.block_until_ready(out_ct)
    assert jnp.allclose(out_ct, ref, atol=2e-4, rtol=2e-4), float(jnp.max(jnp.abs(out_ct - ref)))

    # 3) HW-tiled two-phase path (the large-feature-map code path).
    out_t = sd_forward(h, style, w1, b1, w2, b2, ct_tile=8, hw_tile=128)
    jax.block_until_ready(out_t)
    assert jnp.allclose(out_t, ref, atol=2e-4, rtol=2e-4), float(jnp.max(jnp.abs(out_t - ref)))

    # 4) Non-128-multiple spatial size (exercises the HW zero-padding path).
    h2 = jax.random.normal(k_h, (N, c_x, 12, 12), dtype=jnp.float32)
    s2 = jax.random.normal(k_s, (N, c_style, 12, 12), dtype=jnp.float32)
    ref2 = sd_reference(h2, s2, w1, b1, w2, b2)
    out2 = sd_forward(h2, s2, w1, b1, w2, b2)
    jax.block_until_ready(out2)
    assert jnp.allclose(out2, ref2, atol=2e-4, rtol=2e-4), float(jnp.max(jnp.abs(out2 - ref2)))

    print("KERNEL_OK")
</pallas_src>

<mosaic_0001>
module attributes {stable_mosaic.version = 11 : i64} {
  func.func @_sd_kernel_single(%arg0: i32, %arg1: i32, %arg2: memref<1x16x256xf32, #tpu.memory_space<vmem>>, %arg3: memref<1x5x256xf32, #tpu.memory_space<vmem>>, %arg4: memref<1x32x5xf32, #tpu.memory_space<vmem>>, %arg5: memref<1x16x256xf32, #tpu.memory_space<vmem>>) attributes {dimension_semantics = [#tpu.dimension_semantics<parallel>, #tpu.dimension_semantics<parallel>], iteration_bounds = array<i64: 2, 1>, scalar_prefetch = 0 : i64, scratch_operands = 0 : i64, tpu.core_type = #tpu.core_type<tc>, window_params = [{transform_indices = @transform_0, window_bounds = array<i64: 1, 16, 256>}, {transform_indices = @transform_1, window_bounds = array<i64: 1, 5, 256>}, {transform_indices = @transform_2, window_bounds = array<i64: 1, 32, 5>}, {transform_indices = @transform_3, window_bounds = array<i64: 1, 16, 256>}]} {
    %c0 = arith.constant 0 : index
    %c0_0 = arith.constant 0 : index
    %c0_1 = arith.constant 0 : index
    %0 = vector.load %arg2[%c0, %c0_0, %c0_1] : memref<1x16x256xf32, #tpu.memory_space<vmem>>, vector<1x16x256xf32>
    %1 = vector.shape_cast %0 : vector<1x16x256xf32> to vector<16x256xf32>
    %cst = arith.constant 1.000000e+00 : f32
    %2 = vector.broadcast %cst : f32 to vector<256x1xf32>
    %cst_2 = arith.constant dense<0.000000e+00> : vector<16x1xf32>
    %3 = tpu.matmul %1, %2, %cst_2 {dimension_numbers = #tpu.dot_dimension_numbers<[1], [0], [0], [1], [0, 0, 1, 1], [], []>} : vector<16x256xf32>, vector<256x1xf32>, vector<16x1xf32> -> vector<16x1xf32>
    %4 = arith.mulf %1, %1 : vector<16x256xf32>
    %cst_3 = arith.constant dense<0.000000e+00> : vector<16x1xf32>
    %5 = tpu.matmul %4, %2, %cst_3 {dimension_numbers = #tpu.dot_dimension_numbers<[1], [0], [0], [1], [0, 0, 1, 1], [], []>} : vector<16x256xf32>, vector<256x1xf32>, vector<16x1xf32> -> vector<16x1xf32>
    %cst_4 = arith.constant 3.906250e-03 : f32
    %6 = vector.broadcast %cst_4 : f32 to vector<16x1xf32>
    %7 = arith.mulf %3, %6 : vector<16x1xf32>
    %cst_5 = arith.constant 3.906250e-03 : f32
    %8 = vector.broadcast %cst_5 : f32 to vector<16x1xf32>
    %9 = arith.mulf %5, %8 : vector<16x1xf32>
    %10 = arith.mulf %7, %7 : vector<16x1xf32>
    %11 = arith.subf %9, %10 : vector<16x1xf32>
    %cst_6 = arith.constant 0.000000e+00 : f32
    %12 = vector.broadcast %cst_6 : f32 to vector<16x1xf32>
    %13 = arith.maximumf %11, %12 : vector<16x1xf32>
    %cst_7 = arith.constant 9.99999974E-6 : f32
    %14 = vector.broadcast %cst_7 : f32 to vector<16x1xf32>
    %15 = arith.addf %13, %14 : vector<16x1xf32>
    %16 = math.rsqrt %15 : vector<16x1xf32>
    %c0_8 = arith.constant 0 : index
    %c0_9 = arith.constant 0 : index
    %c0_10 = arith.constant 0 : index
    %17 = vector.load %arg4[%c0_8, %c0_9, %c0_10] : memref<1x32x5xf32, #tpu.memory_space<vmem>>, vector<1x32x5xf32>
    %18 = vector.shape_cast %17 : vector<1x32x5xf32> to vector<32x5xf32>
    %c0_11 = arith.constant 0 : index
    %c0_12 = arith.constant 0 : index
    %c0_13 = arith.constant 0 : index
    %19 = vector.load %arg3[%c0_11, %c0_12, %c0_13] : memref<1x5x256xf32, #tpu.memory_space<vmem>>, vector<1x5x256xf32>
    %20 = vector.shape_cast %19 : vector<1x5x256xf32> to vector<5x256xf32>
    %cst_14 = arith.constant dense<0.000000e+00> : vector<32x256xf32>
    %21 = tpu.matmul %18, %20, %cst_14 {dimension_numbers = #tpu.dot_dimension_numbers<[1], [0], [0], [1], [0, 0, 1, 1], [], []>} : vector<32x5xf32>, vector<5x256xf32>, vector<32x256xf32> -> vector<32x256xf32>
    %22 = vector.extract_strided_slice %21 {offsets = [0, 0], sizes = [16, 256], strides = [1, 1]} : vector<32x256xf32> to vector<16x256xf32>
    %23 = vector.extract_strided_slice %21 {offsets = [16, 0], sizes = [16, 256], strides = [1, 1]} : vector<32x256xf32> to vector<16x256xf32>
    %24 = vector.broadcast %16 : vector<16x1xf32> to vector<16x256xf32>
    %25 = arith.mulf %23, %24 : vector<16x256xf32>
    %26 = vector.broadcast %7 : vector<16x1xf32> to vector<16x256xf32>
    %27 = arith.subf %1, %26 : vector<16x256xf32>
    %28 = arith.mulf %25, %27 : vector<16x256xf32>
    %29 = arith.addf %28, %22 : vector<16x256xf32>
    %c0_15 = arith.constant 0 : index
    %c0_16 = arith.constant 0 : index
    %c0_17 = arith.constant 0 : index
    %30 = vector.load %arg5[%c0_15, %c0_16, %c0_17] : memref<1x16x256xf32, #tpu.memory_space<vmem>>, vector<1x16x256xf32>
    %31 = vector.shape_cast %30 : vector<1x16x256xf32> to vector<16x256xf32>
    %32 = vector.shape_cast %29 : vector<16x256xf32> to vector<1x16x256xf32>
    tpu.vector_store %arg5[%c0_15, %c0_16, %c0_17], %32 {strides = array<i32>} : memref<1x16x256xf32, #tpu.memory_space<vmem>>, vector<1x16x256xf32>,
    return
  }
  func.func @transform_0(%arg0: i32, %arg1: i32) -> (i32, i32, i32) {
    %c0_i32 = arith.constant 0 : i32
    %c0_i32_0 = arith.constant 0 : i32
    return %arg0, %arg1, %c0_i32 : i32, i32, i32
  }
  func.func @transform_1(%arg0: i32, %arg1: i32) -> (i32, i32, i32) {
    %c0_i32 = arith.constant 0 : i32
    %c0_i32_0 = arith.constant 0 : i32
    %c0_i32_1 = arith.constant 0 : i32
    return %arg0, %c0_i32, %c0_i32_0 : i32, i32, i32
  }
  func.func @transform_2(%arg0: i32, %arg1: i32) -> (i32, i32, i32) {
    %c0_i32 = arith.constant 0 : i32
    %c0_i32_0 = arith.constant 0 : i32
    %c0_i32_1 = arith.constant 0 : i32
    return %arg1, %c0_i32, %c0_i32_0 : i32, i32, i32
  }
  func.func @transform_3(%arg0: i32, %arg1: i32) -> (i32, i32, i32) {
    %c0_i32 = arith.constant 0 : i32
    %c0_i32_0 = arith.constant 0 : i32
    return %arg0, %arg1, %c0_i32 : i32, i32, i32
  }
}

</mosaic_0001>

<llo_original>
// kernel: tpu_custom_call.1
$region0: #{tpu_custom_call.1}
  #allocation0 [shape = 'u32[]', space=smem, size = 0x4, offset = 0x4, fixed_abs, tag = 'smem constant byte address 0x4 - core index']
  #allocation1 [shape = 'u32[144,128]{1,0:T(1,128)}', space=vmem, size = 0x12000, scoped, tag = 'internal scratch']
  %s0 = inlined_call_operand.vmem [shape: f32[2,16,256], index: 0, kind: input, shape index: {}]
  %s1 = inlined_call_operand.vmem [shape: f32[2,5,256], index: 1, kind: input, shape index: {}]
  %s2 = inlined_call_operand.vmem [shape: f32[1,32,5], index: 2, kind: input, shape index: {}]
  %s3 = inlined_call_operand.hbm [shape: f32[2,16,256], index: 3, kind: output, shape index: {}]
  %s4 = sld [smem:[#allocation0]]
  $region45: #{tpu_custom_call.1} parent=0
    _
  %s6 = ssub.s32 1, %s4
  %s7 = scalar_select 0, %s6, %s4
  $region1: #{tpu_custom_call.1} parent=0
    #allocation2 [shape = 'u8[32768]{0}', space=vmem, size = 0x8000, scoped, tag = 'output window, operand 0']
    #allocation3 [shape = 's32[2]{0}', space=sflag, size = 0x8, scoped, tag = 'scoped memory for tpu_custom_call.1']
    %8 = vsyncpa [#allocation3], 0
    %s9 = scalar_lea.sflag [#allocation3], 1
    %10 = vsyncpa %s9, 0
    loop: start=0, step=1, limit=4
    $region2: #{tpu_custom_call.1} parent=1 // loop_pre_header
      _
    $region3: #{tpu_custom_call.1} parent=1 // loop_header
      %s12 = sphi 0, %s16
      %p13 = scmp.ge.s32.totalorder %s12, 4
      %s19 = sphi 0, %s31
      %s20 = sphi 0, %s27
      %s21 = sphi 0, %s19
      %s22 = sphi 0, %s20
      %s23 = sphi 0, %s21
      %s24 = sphi 0, %s22
      %s36 = sphi 0, %s38
      %s39 = sphi 0, %s36
      %s40 = sphi 0, %s39
      %s56 = sphi 0, %s40
      %s62 = sphi 0, %s64
      %s65 = sphi 0, %s62
      %s66 = sphi 0, %s65
      %s82 = sphi 0, %s66
      %s88 = sphi 0, %s90
      %s91 = sphi 0, %s88
      %s92 = sphi 0, %s91
      %s108 = sphi 0, %s92
      %s116 = sphi 0, %s118
      %s119 = sphi 0, %s116
      %s120 = sphi 0, %s119
      %s136 = sphi 0, %s120
    $region4: #{tpu_custom_call.1} parent=1 // loop_header_branch
      %15 = sbr.rel (%p13) target = $region8
    $region5: #{tpu_custom_call.1} parent=1 // loop_body
      %s17 = ssub.s32 %s12, 1
      %s18 = ssub.s32 %s12, 2
      %s25 = sadd.s32 1, %s20
      %p26 = scmp.ge.s32.totalorder %s25, 1
      %s27 = scalar_select %p26, 0, %s25
      %s28 = sadd.s32 1, %s19
      %s29 = scalar_select %p26, %s28, %s19
      %p30 = scmp.ge.s32.totalorder %s29, 2
      %s31 = scalar_select %p30, 0, %s29
      %s32 = ssub.s32 %s19, %s31
      %s33 = ssub.s32 %s20, %s27
      %s34 = sor.u32 %s32, %s33
      %p35 = scmp.eq.s32.totalorder %s34, 0
      %s37 = sadd.s32 %s36, 1
      %s38 = scalar_select %p35, %s36, %s37
      %p41 = pneg %p35
      %p42 = scmp.eq.s32.totalorder %s12, 1
      %p43 = por %p41, %p42
      %p44 = scmp.ne.s32.totalorder %s36, %s39
      %p45 = scmp.eq.s32.totalorder %s12, 0
      %p46 = por %p44, %p45
      %p47 = scmp.ne.s32.totalorder %s36, %s39
      %p48 = scmp.eq.s32.totalorder %s17, 1
      %p49 = por %p47, %p48
      %p50 = scmp.ne.s32.totalorder %s39, %s40
      %p51 = scmp.eq.s32.totalorder %s17, 0
      %p52 = por %p50, %p51
      %p53 = scmp.ne.s32.totalorder %s39, %s40
      %p54 = scmp.eq.s32.totalorder %s18, 1
      %p55 = por %p53, %p54
      %p57 = scmp.ne.s32.totalorder %s40, %s56
      %p58 = scmp.eq.s32.totalorder %s18, 0
      %p59 = por %p57, %p58
      %s60 = ssub.s32 %s19, %s31
      %p61 = scmp.eq.s32.totalorder %s60, 0
      %s63 = sadd.s32 %s62, 1
      %s64 = scalar_select %p61, %s62, %s63
      %p67 = pneg %p61
      %p68 = scmp.eq.s32.totalorder %s12, 1
      %p69 = por %p67, %p68
      %p70 = scmp.ne.s32.totalorder %s62, %s65
      %p71 = scmp.eq.s32.totalorder %s12, 0
      %p72 = por %p70, %p71
      %p73 = scmp.ne.s32.totalorder %s62, %s65
      %p74 = scmp.eq.s32.totalorder %s17, 1
      %p75 = por %p73, %p74
      %p76 = scmp.ne.s32.totalorder %s65, %s66
      %p77 = scmp.eq.s32.totalorder %s17, 0
      %p78 = por %p76, %p77
      %p79 = scmp.ne.s32.totalorder %s65, %s66
      %p80 = scmp.eq.s32.totalorder %s18, 1
      %p81 = por %p79, %p80
      %p83 = scmp.ne.s32.totalorder %s66, %s82
      %p84 = scmp.eq.s32.totalorder %s18, 0
      %p85 = por %p83, %p84
      %s86 = ssub.s32 %s20, %s27
      %p87 = scmp.eq.s32.totalorder %s86, 0
      %s89 = sadd.s32 %s88, 1
      %s90 = scalar_select %p87, %s88, %s89
      %p93 = pneg %p87
      %p94 = scmp.eq.s32.totalorder %s12, 1
      %p95 = por %p93, %p94
      %p96 = scmp.ne.s32.totalorder %s88, %s91
      %p97 = scmp.eq.s32.totalorder %s12, 0
      %p98 = por %p96, %p97
      %p99 = scmp.ne.s32.totalorder %s88, %s91
      %p100 = scmp.eq.s32.totalorder %s17, 1
      %p101 = por %p99, %p100
      %p102 = scmp.ne.s32.totalorder %s91, %s92
      %p103 = scmp.eq.s32.totalorder %s17, 0
      %p104 = por %p102, %p103
      %p105 = scmp.ne.s32.totalorder %s91, %s92
      %p106 = scmp.eq.s32.totalorder %s18, 1
      %p107 = por %p105, %p106
      %p109 = scmp.ne.s32.totalorder %s92, %s108
      %p110 = scmp.eq.s32.totalorder %s18, 0
      %p111 = por %p109, %p110
      %s112 = ssub.s32 %s19, %s31
      %s113 = ssub.s32 %s20, %s27
      %s114 = sor.u32 %s112, %s113
      %p115 = scmp.eq.s32.totalorder %s114, 0
      %s117 = sadd.s32 %s116, 1
      %s118 = scalar_select %p115, %s116, %s117
      %p121 = pneg %p115
      %p122 = scmp.eq.s32.totalorder %s12, 1
      %p123 = por %p121, %p122
      %p124 = scmp.ne.s32.totalorder %s116, %s119
      %p125 = scmp.eq.s32.totalorder %s12, 0
      %p126 = por %p124, %p125
      %p127 = scmp.ne.s32.totalorder %s116, %s119
      %p128 = scmp.eq.s32.totalorder %s17, 1
      %p129 = por %p127, %p128
      %p130 = scmp.ne.s32.totalorder %s119, %s120
      %p131 = scmp.eq.s32.totalorder %s17, 0
      %p132 = por %p130, %p131
      %p133 = scmp.ne.s32.totalorder %s119, %s120
      %p134 = scmp.eq.s32.totalorder %s18, 1
      %p135 = por %p133, %p134
      %p137 = scmp.ne.s32.totalorder %s120, %s136
      %p138 = scmp.eq.s32.totalorder %s18, 0
      %p139 = por %p137, %p138
      %p140 = scmp.le.s32.totalorder 1, %s12
      %p141 = scmp.lt.s32.totalorder %s12, 3
      %p142 = pnand %p140, %p141
      %p143 = pneg %p142
      // Predicated region
      $region9: #{tpu_custom_call.1} parent=5 // pred_check
        _
      $region10: #{tpu_custom_call.1} parent=5 // pred_check_branch
        %145 = sbr.rel (%p142) target = $region12
      $region11: #{tpu_custom_call.1} parent=5 // pred_region
        %s146 = ssub.s32 %s12, 1
        // Predicated region
        $region13: #{tpu_custom_call.1} parent=11 // pred_check
          %p147 = pneg %p104
        $region14: #{tpu_custom_call.1} parent=11 // pred_check_branch
          %149 = sbr.rel (%p147) target = $region16
        $region15: #{tpu_custom_call.1} parent=11 // pred_region
          %p150 = scmp.lt.s32.totalorder %s22, 0
          %s151 = scalar_select %p150, %s22, 0
          %s152 = smul.addr %s151, 4
          %s153 = smul.addr %s152, 8
          %s154 = scalar_lea.vmem %s2, %s153
        $region16: #{tpu_custom_call.1} parent=11 // pred_fallthru
          _
      $region12: #{tpu_custom_call.1} parent=5 // pred_fallthru
        _
      %p155 = scmp.lt.s32.totalorder %s12, 2
      // Predicated region
      $region17: #{tpu_custom_call.1} parent=5 // pred_check
        %p156 = pneg %p155
      $region18: #{tpu_custom_call.1} parent=5 // pred_check_branch
        %158 = sbr.rel (%p156) target = $region20
      $region19: #{tpu_custom_call.1} parent=5 // pred_region
        // Predicated region
        $region21: #{tpu_custom_call.1} parent=19 // pred_check
          %p159 = pneg %p46
        $region22: #{tpu_custom_call.1} parent=19 // pred_check_branch
          %161 = sbr.rel (%p159) target = $region24
        $region23: #{tpu_custom_call.1} parent=19 // pred_region
          %s162 = smul.u32 2, %s20
          %p163 = scmp.lt.s32.totalorder %s19, 1
          %s164 = scalar_select %p163, %s19, 1
          %p165 = scmp.lt.s32.totalorder %s162, 1
          %s166 = scalar_select %p165, %s162, 1
          %s167 = smul.addr %s166, 2
          %s168 = smul.addr %s164, 4
          %s169 = sadd.s32 %s167, %s168
          %s170 = smul.addr %s169, 8
          %s171 = scalar_lea.vmem %s0, %s170
          %s172 = smul.u32 2, %s20
        $region24: #{tpu_custom_call.1} parent=19 // pred_fallthru
          _
        // Predicated region
        $region25: #{tpu_custom_call.1} parent=19 // pred_check
          %p173 = pneg %p72
        $region26: #{tpu_custom_call.1} parent=19 // pred_check_branch
          %175 = sbr.rel (%p173) target = $region28
        $region27: #{tpu_custom_call.1} parent=19 // pred_region
          %p176 = scmp.lt.s32.totalorder %s19, 1
          %s177 = scalar_select %p176, %s19, 1
          %s178 = smul.addr %s177, 2
          %s179 = smul.addr %s178, 8
          %s180 = scalar_lea.vmem %s1, %s179
        $region28: #{tpu_custom_call.1} parent=19 // pred_fallthru
          _
      $region20: #{tpu_custom_call.1} parent=5 // pred_fallthru
        _
      %p181 = scmp.le.s32.totalorder 1, %s12
      %p182 = scmp.lt.s32.totalorder %s12, 3
      %p183 = pnand %p181, %p182
      %p184 = pneg %p183
      // Predicated region
      $region29: #{tpu_custom_call.1} parent=5 // pred_check
        _
      $region30: #{tpu_custom_call.1} parent=5 // pred_check_branch
        %186 = sbr.rel (%p183) target = $region32
      $region31: #{tpu_custom_call.1} parent=5 // pred_region
        %s187 = ssub.s32 %s12, 1
        %s188 = smul.u32 2, %s22
        %p189 = scmp.lt.s32.totalorder %s21, 1
        %s190 = scalar_select %p189, %s21, 1
        %p191 = scmp.lt.s32.totalorder %s188, 1
        %s192 = scalar_select %p191, %s188, 1
        %s193 = smul.addr %s192, 2
        %s194 = smul.addr %s190, 4
        %s195 = sadd.s32 %s193, %s194
        %s196 = smul.addr %s195, 8
        %s197 = scalar_lea.vmem %s0, %s196
        %p198 = pneg %p52
        %p199 = pneg %p49
        %p200 = scmp.lt.s32.totalorder %s21, 1
        %s201 = scalar_select %p200, %s21, 1
        %s202 = smul.addr %s201, 2
        %s203 = smul.addr %s202, 8
        %s204 = scalar_lea.vmem %s1, %s203
        %p205 = pneg %p78
        %p206 = pneg %p75
        %p207 = scmp.lt.s32.totalorder %s22, 0
        %s208 = scalar_select %p207, %s22, 0
        %s209 = smul.addr %s208, 4
        %s210 = smul.addr %s209, 8
        %s211 = scalar_lea.vmem %s2, %s210
        %p212 = pneg %p104
        %p213 = pneg %p101
        %p214 = pneg %p132
        %p215 = pneg %p129
        %s216 = sand.u32 %s119, 1
        %s217 = scalar_lea.sflag [#allocation3], %s216
        %s218 = sand.u32 %s119, 1
        %s219 = smul.addr %s218, 32
        %s220 = scalar_lea.vmem [#allocation2], %s219
        %s221 = smul.u32 2, %s22
        %p222 = scmp.lt.s32.totalorder %s21, 1
        %s223 = scalar_select %p222, %s21, 1
        %p224 = scmp.lt.s32.totalorder %s221, 1
        %s225 = scalar_select %p224, %s221, 1
        %s226 = smul.addr %s225, 2
        %s227 = smul.addr %s223, 4
        %s228 = sadd.s32 %s226, %s227
        %s229 = smul.addr %s228, 8
        %s230 = scalar_lea.vmem %s0, %s229
        %s231 = smul.u32 2, %s22
        %p232 = scmp.lt.s32.totalorder %s21, 1
        %s233 = scalar_select %p232, %s21, 1
        %s234 = smul.addr %s233, 2
        %s235 = smul.addr %s234, 8
        %s236 = scalar_lea.vmem %s1, %s235
        %p237 = scmp.lt.s32.totalorder %s22, 0
        %s238 = scalar_select %p237, %s22, 0
        %s239 = smul.addr %s238, 4
        %s240 = smul.addr %s239, 8
        %s241 = scalar_lea.vmem %s2, %s240
        %s242 = smul.u32 2, %s22
        %v243 = vld [vmem:[%s230] sm:$0xff]
        %v244 = vld [vmem:[%s230 + $0x8] sm:$0xff]
        %v245 = vld [vmem:[%s230 + $0x10] sm:$0xff]
        %v246 = vld [vmem:[%s230 + $0x18] sm:$0xff]
        %247 = vmatprep.subr.mxu0 0.0
        %248 = vmatpush1.msra.mxu0 1.0
        %249 = vmatprep.subr.mxu0 0.0
        %250 = vmatpush1.msra.mxu0 1.0
        %251 = vmatprep.subr.mxu0 0.0
        %252 = vmatpush1.msra.mxu0 1.0
        %253 = vmatprep.subr.mxu0 0.0
        %254 = vmatpush1.msra.mxu0 1.0
        %255 = vmatprep.subr.mxu0 0.0
        %256 = vmatpush1.msra.mxu0 1.0
        %257 = vmatprep.subr.mxu0 0.0
        %258 = vmatpush1.msra.mxu0 1.0
        %259 = vmatprep.subr.mxu0 0.0
        %260 = vmatpush1.msra.mxu0 1.0
        %261 = vmatprep.subr.mxu0 0.0
        %262 = vmatpush1.msra.mxu0 1.0
        %263 = vmatprep.subr.mxu0 0.0
        %264 = vmatpush1.msra.mxu0 1.0
        %265 = vmatprep.subr.mxu0 0.0
        %266 = vmatpush1.msra.mxu0 1.0
        %267 = vmatprep.subr.mxu0 0.0
        %268 = vmatpush1.msra.mxu0 1.0
        %269 = vmatprep.subr.mxu0 0.0
        %270 = vmatpush1.msra.mxu0 1.0
        %271 = vmatprep.subr.mxu0 0.0
        %272 = vmatpush1.msra.mxu0 1.0
        %273 = vmatprep.subr.mxu0 0.0
        %274 = vmatpush1.msra.mxu0 1.0
        %275 = vmatprep.subr.mxu0 0.0
        %276 = vmatpush1.msra.mxu0 1.0
        %277 = vmatprep.subr.mxu0 0.0
        %278 = vmatpush1.msra.mxu0 1.0
        %279 = vmatprep.subr.mxu0 0.0
        %280 = vmatpush2.msra.mxu0 1.0
        %281 = vmatprep.subr.mxu0 0.0
        %282 = vmatpush2.msra.mxu0 1.0
        %283 = vmatprep.subr.mxu0 0.0
        %284 = vmatpush2.msra.mxu0 1.0
        %285 = vmatprep.subr.mxu0 0.0
        %286 = vmatpush2.msra.mxu0 1.0
        %287 = vmatprep.subr.mxu0 0.0
        %288 = vmatpush2.msra.mxu0 1.0
        %289 = vmatprep.subr.mxu0 0.0
        %290 = vmatpush2.msra.mxu0 1.0
        %291 = vmatprep.subr.mxu0 0.0
        %292 = vmatpush2.msra.mxu0 1.0
        %293 = vmatprep.subr.mxu0 0.0
        %294 = vmatpush2.msra.mxu0 1.0
        %295 = vmatprep.subr.mxu0 0.0
        %296 = vmatpush2.msra.mxu0 1.0
        %297 = vmatprep.subr.mxu0 0.0
        %298 = vmatpush2.msra.mxu0 1.0
        %299 = vmatprep.subr.mxu0 0.0
        %300 = vmatpush2.msra.mxu0 1.0
        %301 = vmatprep.subr.mxu0 0.0
        %302 = vmatpush2.msra.mxu0 1.0
        %303 = vmatprep.subr.mxu0 0.0
        %304 = vmatpush2.msra.mxu0 1.0
        %305 = vmatprep.subr.mxu0 0.0
        %306 = vmatpush2.msra.mxu0 1.0
        %307 = vmatprep.subr.mxu0 0.0
        %308 = vmatpush2.msra.mxu0 1.0
        %309 = vmatprep.subr.mxu0 0.0
        %310 = vmatpush2.msra.mxu0 1.0
        %311 = vmatprep.mubr.f32.mxu0 %v244
        %312 = vmatmul.mubr.f32.gmra.mxu0 %v243
        %v313 = vpop.f32.mrf.mxu0
        %v314 = vadd.f32 0.0, %v313
        %v315 = vpop.f32.mrf.mxu0
        %316 = vmatprep.mubr.f32.mxu0 %v246
        %317 = vmatmul.mubr.f32.gmra.mxu0 %v245
        %v318 = vpop.f32.mrf.mxu0
        %v319 = vadd.f32 0.0, %v318
        %v320 = vpop.f32.mrf.mxu0
        %321 = vdwg.mxu0
        %v322 = vmul.f32 %v243, %v243
        %v323 = vmul.f32 %v244, %v244
        %v324 = vmul.f32 %v245, %v245
        %v325 = vmul.f32 %v246, %v246
        %326 = vmatprep.subr.mxu0 0.0
        %327 = vmatpush1.msra.mxu0 1.0
        %328 = vmatprep.subr.mxu0 0.0
        %329 = vmatpush1.msra.mxu0 1.0
        %330 = vmatprep.subr.mxu0 0.0
        %331 = vmatpush1.msra.mxu0 1.0
        %332 = vmatprep.subr.mxu0 0.0
        %333 = vmatpush1.msra.mxu0 1.0
        %334 = vmatprep.subr.mxu0 0.0
        %335 = vmatpush1.msra.mxu0 1.0
        %336 = vmatprep.subr.mxu0 0.0
        %337 = vmatpush1.msra.mxu0 1.0
        %338 = vmatprep.subr.mxu0 0.0
        %339 = vmatpush1.msra.mxu0 1.0
        %340 = vmatprep.subr.mxu0 0.0
        %341 = vmatpush1.msra.mxu0 1.0
        %342 = vmatprep.subr.mxu0 0.0
        %343 = vmatpush1.msra.mxu0 1.0
        %344 = vmatprep.subr.mxu0 0.0
        %345 = vmatpush1.msra.mxu0 1.0
        %346 = vmatprep.subr.mxu0 0.0
        %347 = vmatpush1.msra.mxu0 1.0
        %348 = vmatprep.subr.mxu0 0.0
        %349 = vmatpush1.msra.mxu0 1.0
        %350 = vmatprep.subr.mxu0 0.0
        %351 = vmatpush1.msra.mxu0 1.0
        %352 = vmatprep.subr.mxu0 0.0
        %353 = vmatpush1.msra.mxu0 1.0
        %354 = vmatprep.subr.mxu0 0.0
        %355 = vmatpush1.msra.mxu0 1.0
        %356 = vmatprep.subr.mxu0 0.0
        %357 = vmatpush1.msra.mxu0 1.0
        %358 = vmatprep.subr.mxu0 0.0
        %359 = vmatpush2.msra.mxu0 1.0
        %360 = vmatprep.subr.mxu0 0.0
        %361 = vmatpush2.msra.mxu0 1.0
        %362 = vmatprep.subr.mxu0 0.0
        %363 = vmatpush2.msra.mxu0 1.0
        %364 = vmatprep.subr.mxu0 0.0
        %365 = vmatpush2.msra.mxu0 1.0
        %366 = vmatprep.subr.mxu0 0.0
        %367 = vmatpush2.msra.mxu0 1.0
        %368 = vmatprep.subr.mxu0 0.0
        %369 = vmatpush2.msra.mxu0 1.0
        %370 = vmatprep.subr.mxu0 0.0
        %371 = vmatpush2.msra.mxu0 1.0
        %372 = vmatprep.subr.mxu0 0.0
        %373 = vmatpush2.msra.mxu0 1.0
        %374 = vmatprep.subr.mxu0 0.0
        %375 = vmatpush2.msra.mxu0 1.0
        %376 = vmatprep.subr.mxu0 0.0
        %377 = vmatpush2.msra.mxu0 1.0
        %378 = vmatprep.subr.mxu0 0.0
        %379 = vmatpush2.msra.mxu0 1.0
        %380 = vmatprep.subr.mxu0 0.0
        %381 = vmatpush2.msra.mxu0 1.0
        %382 = vmatprep.subr.mxu0 0.0
        %383 = vmatpush2.msra.mxu0 1.0
        %384 = vmatprep.subr.mxu0 0.0
        %385 = vmatpush2.msra.mxu0 1.0
        %386 = vmatprep.subr.mxu0 0.0
        %387 = vmatpush2.msra.mxu0 1.0
        %388 = vmatprep.subr.mxu0 0.0
        %389 = vmatpush2.msra.mxu0 1.0
        %390 = vmatprep.mubr.f32.mxu0 %v323
        %391 = vmatmul.mubr.f32.gmra.mxu0 %v322
        %v392 = vpop.f32.mrf.mxu0
        %v393 = vadd.f32 0.0, %v392
        %v394 = vpop.f32.mrf.mxu0
        %395 = vmatprep.mubr.f32.mxu0 %v325
        %396 = vmatmul.mubr.f32.gmra.mxu0 %v324
        %v397 = vpop.f32.mrf.mxu0
        %v398 = vadd.f32 0.0, %v397
        %v399 = vpop.f32.mrf.mxu0
        %400 = vdwg.mxu0
        %v401 = vmul.f32 %v314, 0.00390625
        %v402 = vmul.f32 %v319, 0.00390625
        %v403 = vmul.f32 %v393, 0.00390625
        %v404 = vmul.f32 %v398, 0.00390625
        %v405 = vmul.f32 %v401, %v401
        %v406 = vmul.f32 %v402, %v402
        %v407 = vsub.f32 %v403, %v405
        %v408 = vsub.f32 %v404, %v406
        %v409 = vmax.f32 %v407, 0.0
        %v410 = vmax.f32 %v408, 0.0
        %v411 = vadd.f32 %v409, 1e-05
        %v412 = vadd.f32 %v410, 1e-05
        %v413 = vrsqrt.pop %v411
        %v414 = vrsqrt.pop %v412
        %v415 = vld [vmem:[%s241] sm:$0xff]
        %v416 = vld [vmem:[%s241 + $0x8] sm:$0xff]
        %v417 = vld [vmem:[%s241 + $0x10] sm:$0xff]
        %v418 = vld [vmem:[%s241 + $0x18] sm:$0xff]
        %v419 = vld [vmem:[%s236] sm:$0x1f]
        %v420 = vld [vmem:[%s236 + $0x8] sm:$0x1f]
        %vm421 = vcmask 39936
        %v423 = vsel %vm421, %v415, 0
        %v426 = vsel %vm421, %v416, 0
        %v429 = vsel %vm421, %v417, 0
        %v432 = vsel %vm421, %v418, 0
        %vm434 = vcmask 1044480
        %v436 = vsel %vm434, %v419, 0
        %v439 = vsel %vm434, %v420, 0
        %441 = vmatprep.subr.mxu0 0.0
        %442 = vmatpush1.msra.mxu0 0.0
        %443 = vmatprep.subr.mxu0 0.0
        %444 = vmatpush1.msra.mxu0 0.0
        %445 = vmatprep.subr.mxu0 0.0
        %446 = vmatpush1.msra.mxu0 0.0
        %447 = vmatprep.subr.mxu0 0.0
        %448 = vmatpush1.msra.mxu0 0.0
        %449 = vmatprep.subr.mxu0 0.0
        %450 = vmatpush1.msra.mxu0 0.0
        %451 = vmatprep.subr.mxu0 0.0
        %452 = vmatpush1.msra.mxu0 0.0
        %453 = vmatprep.subr.mxu0 0.0
        %454 = vmatpush1.msra.mxu0 0.0
        %455 = vmatprep.subr.mxu0 0.0
        %456 = vmatpush1.msra.mxu0 0.0
        %457 = vmatprep.subr.mxu0 0.0
        %458 = vmatpush1.msra.mxu0 0.0
        %459 = vmatprep.subr.mxu0 0.0
        %460 = vmatpush1.msra.mxu0 0.0
        %461 = vmatprep.subr.mxu0 0.0
        %462 = vmatpush1.msra.mxu0 0.0
        %463 = vmatprep.subr.mxu0 0.0
        %464 = vmatpush1.msra.mxu0 0.0
        %465 = vmatprep.subr.mxu0 0.0
        %466 = vmatpush1.msra.mxu0 0.0
        %467 = vmatprep.subr.mxu0 0.0
        %468 = vmatpush1.msra.mxu0 0.0
        %469 = vmatprep.subr.mxu0 0.0
        %470 = vmatpush1.msra.mxu0 0.0
        %471 = vmatprep.subr.mxu0 %v439
        %472 = vmatpush1.msra.mxu0 %v436
        %473 = vmatprep.subr.mxu0 0.0
        %474 = vmatpush2.msra.mxu0 0.0
        %475 = vmatprep.subr.mxu0 0.0
        %476 = vmatpush2.msra.mxu0 0.0
        %477 = vmatprep.subr.mxu0 0.0
        %478 = vmatpush2.msra.mxu0 0.0
        %479 = vmatprep.subr.mxu0 0.0
        %480 = vmatpush2.msra.mxu0 0.0
        %481 = vmatprep.subr.mxu0 0.0
        %482 = vmatpush2.msra.mxu0 0.0
        %483 = vmatprep.subr.mxu0 0.0
        %484 = vmatpush2.msra.mxu0 0.0
        %485 = vmatprep.subr.mxu0 0.0
        %486 = vmatpush2.msra.mxu0 0.0
        %487 = vmatprep.subr.mxu0 0.0
        %488 = vmatpush2.msra.mxu0 0.0
        %489 = vmatprep.subr.mxu0 0.0
        %490 = vmatpush2.msra.mxu0 0.0
        %491 = vmatprep.subr.mxu0 0.0
        %492 = vmatpush2.msra.mxu0 0.0
        %493 = vmatprep.subr.mxu0 0.0
        %494 = vmatpush2.msra.mxu0 0.0
        %495 = vmatprep.subr.mxu0 0.0
        %496 = vmatpush2.msra.mxu0 0.0
        %497 = vmatprep.subr.mxu0 0.0
        %498 = vmatpush2.msra.mxu0 0.0
        %499 = vmatprep.subr.mxu0 0.0
        %500 = vmatpush2.msra.mxu0 0.0
        %501 = vmatprep.subr.mxu0 0.0
        %502 = vmatpush2.msra.mxu0 0.0
        %503 = vmatprep.subr.mxu0 0.0
        %504 = vmatpush2.msra.mxu0 0.0
        %505 = vmatprep.mubr.f32.mxu0 0.0
        %506 = vmatmul.mubr.f32.gmra.mxu0 %v423
        %v507 = vpop.f32.mrf.mxu0
        %v508 = vadd.f32 0.0, %v507
        %v509 = vpop.f32.mrf.mxu0
        %v510 = vadd.f32 0.0, %v509
        %511 = vmatprep.mubr.f32.mxu0 0.0
        %512 = vmatmul.mubr.f32.gmra.mxu0 %v426
        %v513 = vpop.f32.mrf.mxu0
        %v514 = vadd.f32 0.0, %v513
        %v515 = vpop.f32.mrf.mxu0
        %v516 = vadd.f32 0.0, %v515
        %517 = vmatprep.mubr.f32.mxu0 0.0
        %518 = vmatmul.mubr.f32.gmra.mxu0 %v429
        %v519 = vpop.f32.mrf.mxu0
        %v520 = vadd.f32 0.0, %v519
        %v521 = vpop.f32.mrf.mxu0
        %v522 = vadd.f32 0.0, %v521
        %523 = vmatprep.mubr.f32.mxu0 0.0
        %524 = vmatmul.mubr.f32.gmra.mxu0 %v432
        %v525 = vpop.f32.mrf.mxu0
        %v526 = vadd.f32 0.0, %v525
        %v527 = vpop.f32.mrf.mxu0
        %v528 = vadd.f32 0.0, %v527
        %529 = vdwg.mxu0
        %531 = vset.pattern.permute.xlu0 0
        %532 = vperm.xlu0 %531, %v413
        %v533 = vpop.permute.xlu0 %532
        %536 = vset.pattern.permute.xlu0 0
        %537 = vperm.xlu0 %536, %v414
        %v538 = vpop.permute.xlu0 %537
        %v540 = vmul.f32 %v520, %v533
        %v541 = vmul.f32 %v522, %v533
        %v542 = vmul.f32 %v526, %v538
        %v543 = vmul.f32 %v528, %v538
        %545 = vset.pattern.permute.xlu0 0
        %546 = vperm.xlu0 %545, %v401
        %v547 = vpop.permute.xlu0 %546
        %550 = vset.pattern.permute.xlu0 0
        %551 = vperm.xlu0 %550, %v402
        %v552 = vpop.permute.xlu0 %551
        %v554 = vsub.f32 %v243, %v547
        %v555 = vsub.f32 %v244, %v547
        %v556 = vsub.f32 %v245, %v552
        %v557 = vsub.f32 %v246, %v552
        %v558 = vmul.f32 %v540, %v554
        %v559 = vmul.f32 %v541, %v555
        %v560 = vmul.f32 %v542, %v556
        %v561 = vmul.f32 %v543, %v557
        %v562 = vadd.f32 %v558, %v508
        %v563 = vadd.f32 %v559, %v510
        %v564 = vadd.f32 %v560, %v514
        %v565 = vadd.f32 %v561, %v516
        %566 = vst [vmem:[%s220] sm:$0xff] %v562
        %567 = vst [vmem:[%s220 + $0x8] sm:$0xff] %v563
        %568 = vst [vmem:[%s220 + $0x10] sm:$0xff] %v564
        %569 = vst [vmem:[%s220 + $0x18] sm:$0xff] %v565
        %s570 = sand.u32 %s119, 1
        %s571 = scalar_lea.sflag [#allocation3], %s570
        %s572 = sand.u32 %s119, 1
        %s573 = smul.addr %s572, 32
        %s574 = scalar_lea.vmem [#allocation2], %s573
        // Predicated region
        $region33: #{tpu_custom_call.1} parent=31 // pred_check
          %p575 = pneg %p129
        $region34: #{tpu_custom_call.1} parent=31 // pred_check_branch
          %577 = sbr.rel (%p575) target = $region36
        $region35: #{tpu_custom_call.1} parent=31 // pred_region
          %s578 = smul.u32 2, %s22
          %s580 = ssub.s32 512, 512
          %581 = vsyncadd %s571, %s580
          %s582 = smul.addr %s578, 2
          %s583 = smul.addr %s21, 4
          %s584 = sadd.s32 %s582, %s583
          %s585 = smul.addr %s584, 128
          %s586 = scalar_lea.hbm %s3, %s585
          %s587 = sshll.u32 %s574, 4
          %s588 = int_to_ptr.vmem [resolvable:$true] %s587
          %593 = dma.vmem_to_hbm [thread:$0]  %s588, 512, %s586, %s571, 256, 256, 16
        $region36: #{tpu_custom_call.1} parent=31 // pred_fallthru
          _
      $region32: #{tpu_custom_call.1} parent=5 // pred_fallthru
        _
      %p594 = scmp.le.s32.totalorder 2, %s12
      // Predicated region
      $region37: #{tpu_custom_call.1} parent=5 // pred_check
        %p595 = pneg %p594
      $region38: #{tpu_custom_call.1} parent=5 // pred_check_branch
        %597 = sbr.rel (%p595) target = $region40
      $region39: #{tpu_custom_call.1} parent=5 // pred_region
        %s598 = ssub.s32 %s12, 2
        // Predicated region
        $region41: #{tpu_custom_call.1} parent=39 // pred_check
          %p599 = pneg %p135
        $region42: #{tpu_custom_call.1} parent=39 // pred_check_branch
          %601 = sbr.rel (%p599) target = $region44
        $region43: #{tpu_custom_call.1} parent=39 // pred_region
          %s602 = sand.u32 %s120, 1
          %s603 = scalar_lea.sflag [#allocation3], %s602
          %s604 = sand.u32 %s120, 1
          %s605 = smul.addr %s604, 32
          %s606 = scalar_lea.vmem [#allocation2], %s605
          %607 = dma.done %s603, 512
        $region44: #{tpu_custom_call.1} parent=39 // pred_fallthru
          _
      $region40: #{tpu_custom_call.1} parent=5 // pred_fallthru
        _
    $region6: #{tpu_custom_call.1} parent=1 // loop_footer
      %s16 = sadd.s32 1, %s12
    $region7: #{tpu_custom_call.1} parent=1 // loop_footer_branch
      %11 = sbr.rel target = $region3
    $region8: #{tpu_custom_call.1} parent=1 // loop_exit
      _
    %608 = vsyncpa [#allocation3], 1
    %s609 = scalar_lea.sflag [#allocation3], 1
    %610 = vsyncpa %s609, 1

</llo_original>
